<compile_context>
chip_gen: v7x
topology: tpu7x:2x2x1
jax: 0.10.0
libtpu: 0.0.40
codegen_flags: <defaults>
</compile_context>

<pallas_src>
import jax
import jax.numpy as jnp
from jax.experimental import pallas as pl
from jax.experimental.pallas import tpu as pltpu

# ----------------------------- problem sizes -----------------------------
B = 2                 # batch of (belief, state) pairs
H = 32                # belief size
Z = 16                # state size
CONT_ACTION_SIZE = 2
NUM_TOOLS = 36
ACTION_SIZE = 1 + CONT_ACTION_SIZE      # discrete tool id + continuous dims
PLANNING_HORIZON = 4
OPT_ITERS = 2
CANDIDATES = 64
TOP_CANDIDATES = 8
MIN_ACTION = float("-inf")
MAX_ACTION = float("inf")

N = B * CANDIDATES    # 128 rollouts -> exactly one lane-width
TILE_N = 128          # candidates per kernel grid step (N % TILE_N == 0)

K_FUSED = H + Z + ACTION_SIZE            # 51 fused recurrence K
K_PAD = ((K_FUSED + 7) // 8) * 8         # 56: pad to a sublane multiple (zero cols)


# ----------------------------- Pallas kernel -----------------------------
def rollout_kernel(belief_ref, state_ref, act_ref,
                   w_rec_ref, w_out_ref, bias_ref,
                   out_ref, x_ref):
    """Roll the transition model forward T steps and accumulate rewards.

    All activations are (features, TILE_N): lane-dense, candidates on lanes.
    x_ref is a persistent (K_PAD, TILE_N) f32 scratch holding
    [belief(0:H) ; state(H:H+Z) ; action_t(H+Z:H+Z+A) ; zero pad].
    """
    h = belief_ref.shape[0]
    z = state_ref.shape[0]
    horizon, a, n = act_ref.shape

    # Weights stay f32: K is tiny, and f32 keeps ranking parity with the
    # reference (and avoids the unsupported bf16xbf16=f32 dot path).
    w_rec = w_rec_ref[...]                          # (H, K_PAD) fused [Wb^T|Ws^T|Wa^T|0]
    w_out = w_out_ref[...]                          # (Z, H)     Wbs^T

    # Hoist all lane-broadcasts of the packed biases / reward readout once;
    # the unrolled T loop would otherwise re-trace a broadcast per iteration.
    bias = bias_ref[...]                            # (H, 4) f32 packed
    bb_b = jnp.broadcast_to(bias[:, 0:1], (h, n))   # belief bias
    bs_b = jnp.broadcast_to(bias[:z, 1:2], (z, n))  # state bias
    wrs_b = jnp.broadcast_to(bias[:z, 2:3], (z, n))  # reward-from-state weights
    wrb_b = jnp.broadcast_to(bias[:, 3:4], (h, n))   # reward-from-belief weights

    # Zero the scratch once (pad rows must be finite: they hit zero W columns),
    # then fill the 8-aligned belief/state row slices -> unmasked stores.
    x_ref[...] = jnp.zeros_like(x_ref)
    x_ref[0:h, :] = belief_ref[...]
    x_ref[h:h + z, :] = state_ref[...]

    returns = jnp.zeros((1, n), dtype=jnp.float32)

    # Static (small) horizon loop: a recurrence, so it cannot be a grid axis.
    # Exactly 2 dependent MXU pushes per step on the critical path.
    for t in range(horizon):
        x_ref[h + z:h + z + a, :] = act_ref[t]      # 3 action rows for this step
        x = x_ref[...]                              # (K_PAD, TILE_N), no concat copies
        belief = jnp.tanh(
            jnp.dot(w_rec, x, preferred_element_type=jnp.float32) + bb_b)
        state = jnp.tanh(
            jnp.dot(w_out, belief, preferred_element_type=jnp.float32) + bs_b)
        # Linear reward readout on VPU (mul) + XLU (sublane reduce); keeps the
        # (.,1)-output matmuls off the MXU entirely.
        returns = returns + (jnp.sum(wrb_b * belief, axis=0, keepdims=True)
                             + jnp.sum(wrs_b * state, axis=0, keepdims=True))
        if t + 1 < horizon:                         # no x read after the last step
            x_ref[0:h, :] = belief
            x_ref[h:h + z, :] = state

    out_ref[...] = returns                          # (1, TILE_N) lane-dense store


def rollout_returns(belief_cn, state_cn, act_cn, packed):
    """belief (H,N), state (Z,N), actions (T,A,N) -> returns (N,)."""
    h, n = belief_cn.shape
    z = state_cn.shape[0]
    t, a, _ = act_cn.shape
    w_rec, w_out, bias_pack = packed

    grid = (n // TILE_N,)     # (1,) at these sizes: overhead-bound, keep one step
    out = pl.pallas_call(
        rollout_kernel,
        out_shape=jax.ShapeDtypeStruct((1, n), jnp.float32),
        grid_spec=pltpu.PrefetchScalarGridSpec(
            num_scalar_prefetch=0,
            grid=grid,
            in_specs=[
                pl.BlockSpec((h, TILE_N), lambda i: (0, i)),        # belief
                pl.BlockSpec((z, TILE_N), lambda i: (0, i)),        # state
                pl.BlockSpec((t, a, TILE_N), lambda i: (0, 0, i)),  # packed actions
                pl.BlockSpec(w_rec.shape, lambda i: (0, 0)),        # fused recurrence W
                pl.BlockSpec(w_out.shape, lambda i: (0, 0)),        # state output W
                pl.BlockSpec(bias_pack.shape, lambda i: (0, 0)),    # packed biases/readout
            ],
            out_specs=pl.BlockSpec((1, TILE_N), lambda i: (0, i)),
            scratch_shapes=[pltpu.VMEM((K_PAD, TILE_N), jnp.float32)],
        ),
        compiler_params=pltpu.CompilerParams(
            dimension_semantics=("parallel",)),
    )(belief_cn, state_cn, act_cn, w_rec, w_out, bias_pack)
    return out[0]


# --------------------------- planner (CEM loop) ---------------------------
def make_params(key):
    ks = jax.random.split(key, 8)
    scale = 0.1
    wb = scale * jax.random.normal(ks[0], (H, H), jnp.float32)
    ws = scale * jax.random.normal(ks[1], (Z, H), jnp.float32)
    wa = scale * jax.random.normal(ks[2], (ACTION_SIZE, H), jnp.float32)
    bb = scale * jax.random.normal(ks[3], (1, H), jnp.float32)
    wbs = scale * jax.random.normal(ks[4], (H, Z), jnp.float32)
    bs = scale * jax.random.normal(ks[5], (1, Z), jnp.float32)
    wrb = scale * jax.random.normal(ks[6], (H, 1), jnp.float32)
    wrs = scale * jax.random.normal(ks[7], (Z, 1), jnp.float32)
    return (wb, ws, wa, bb, wbs, bs, wrb, wrs)


@jax.jit
def mpc_planner_forward(belief, state, params, key):
    """JAX/Pallas equivalent of MPCPlanner.forward."""
    b, h = belief.shape
    z = state.shape[1]
    n = b * CANDIDATES

    # ---- pack the 8 weight/bias tensors into 3 kernel operands (transposed
    # ---- to the candidates-on-lanes layout; action projection fused into the
    # ---- recurrence weights, K padded with zero columns to a sublane multiple) ----
    wb, ws, wa, bb, wbs, bs, wrb, wrs = params
    w_rec = jnp.zeros((h, K_PAD), jnp.float32)
    w_rec = w_rec.at[:, :h].set(wb.T)
    w_rec = w_rec.at[:, h:h + z].set(ws.T)
    w_rec = w_rec.at[:, h + z:h + z + ACTION_SIZE].set(wa.T)
    w_out = wbs.T                                           # (Z, H)
    bias_pack = jnp.zeros((h, 4), jnp.float32)
    bias_pack = bias_pack.at[:, 0].set(bb[0])
    bias_pack = bias_pack.at[:z, 1].set(bs[0])
    bias_pack = bias_pack.at[:z, 2].set(wrs[:, 0])
    bias_pack = bias_pack.at[:, 3].set(wrb[:, 0])
    packed = (w_rec, w_out, bias_pack)

    # expand belief/state to one copy per candidate, column index = b*C + c
    belief_cn = jnp.broadcast_to(belief.T[:, :, None],
                                 (h, b, CANDIDATES)).reshape(h, n)
    state_cn = jnp.broadcast_to(state.T[:, :, None],
                                (z, b, CANDIDATES)).reshape(z, n)

    action_mean = jnp.zeros((PLANNING_HORIZON, b, 1, CONT_ACTION_SIZE), jnp.float32)
    action_std = jnp.ones((PLANNING_HORIZON, b, 1, CONT_ACTION_SIZE), jnp.float32)
    freq = jnp.ones((PLANNING_HORIZON, b, 1, NUM_TOOLS), jnp.float32)

    for _ in range(OPT_ITERS):
        key, k_disc, k_cont = jax.random.split(key, 3)

        # --- sample discrete tool ids (torch.multinomial w/ replacement) ---
        # TODO(synk): JAX PRNG sampling differs bit-for-bit from torch RNG.
        freq_flat = freq.reshape(-1, NUM_TOOLS)                       # (T*B, num_tools)
        disc_int = jax.random.categorical(
            k_disc, jnp.log(freq_flat)[:, None, :],
            shape=(PLANNING_HORIZON * b, CANDIDATES))                 # (T*B, C) int
        disc_tbc = disc_int.reshape(PLANNING_HORIZON, b, CANDIDATES)  # for top-k refit
        disc_cn = disc_int.reshape(PLANNING_HORIZON, 1, n).astype(jnp.float32)

        # --- sample continuous actions from current Gaussian ---
        noise = jax.random.normal(
            k_cont, (PLANNING_HORIZON, b, CANDIDATES, CONT_ACTION_SIZE), jnp.float32)
        cont4 = jnp.clip(action_mean + action_std * noise,
                         MIN_ACTION, MAX_ACTION)                      # no-op clip (±inf)
        cont_cn = jnp.transpose(cont4, (0, 3, 1, 2)).reshape(
            PLANNING_HORIZON, CONT_ACTION_SIZE, n)

        # one packed action layout (T, A, N): layout plumbing, free under jit
        act_cn = jnp.concatenate([disc_cn, cont_cn], axis=1)          # (T, 3, N)

        # --- hot path: transition rollout + reward, summed over horizon ---
        returns = rollout_returns(belief_cn, state_cn, act_cn, packed)  # (N,)

        # --- pick top-k candidates per batch element ---
        _, topk = jax.lax.top_k(returns.reshape(b, CANDIDATES), TOP_CANDIDATES)   # (B, K)

        idx3 = jnp.broadcast_to(topk[None, :, :],
                                (PLANNING_HORIZON, b, TOP_CANDIDATES))
        disc_best = jnp.take_along_axis(disc_tbc, idx3, axis=2)                   # (T,B,K)
        idx4 = jnp.broadcast_to(topk[None, :, :, None],
                                (PLANNING_HORIZON, b, TOP_CANDIDATES, CONT_ACTION_SIZE))
        cont_best = jnp.take_along_axis(cont4, idx4, axis=2)                      # (T,B,K,2)

        # --- refit continuous Gaussian (ddof=0 matches torch unbiased=False) ---
        action_mean = cont_best.mean(axis=2, keepdims=True)
        action_std = cont_best.std(axis=2, keepdims=True)

        # --- refit discrete frequencies (torch.histc + Laplace smoothing) ---
        onehot = jax.nn.one_hot(disc_best, NUM_TOOLS, dtype=jnp.float32)
        hist = onehot.sum(axis=2) + 1.0                               # (T, B, num_tools)
        hist = hist / hist.sum(axis=-1, keepdims=True)
        freq = hist[:, :, None, :]                                    # (T, B, 1, num_tools)

    # --- final action: argmax tool at t=0, mean continuous action at t=0 ---
    discrete_action = jnp.argmax(freq[0], axis=-1).astype(jnp.float32)   # (B, 1)
    cont_action = action_mean[0][:, 0, :]                                # (B, 2)
    action = jnp.concatenate([discrete_action, cont_action], axis=1)     # (B, 3)
    return action


# --------------------------------- main -----------------------------------
if __name__ == "__main__":
    root = jax.random.PRNGKey(0)
    k_belief, k_state, k_params, k_plan = jax.random.split(root, 4)

    belief = jax.random.normal(k_belief, (B, H), jnp.float32)
    state = jax.random.normal(k_state, (B, Z), jnp.float32)
    params = make_params(k_params)

    action = mpc_planner_forward(belief, state, params, k_plan)
    action = jax.block_until_ready(action)

    assert action.shape == (B, 1 + CONT_ACTION_SIZE)
    assert jnp.all(jnp.isfinite(action))
    print("KERNEL_OK")
</pallas_src>

<mosaic_0001>
module attributes {stable_mosaic.version = 11 : i64} {
  func.func @rollout_kernel(%arg0: i32, %arg1: memref<32x128xf32, #tpu.memory_space<vmem>>, %arg2: memref<16x128xf32, #tpu.memory_space<vmem>>, %arg3: memref<4x3x128xf32, #tpu.memory_space<vmem>>, %arg4: memref<32x56xf32, #tpu.memory_space<vmem>>, %arg5: memref<16x32xf32, #tpu.memory_space<vmem>>, %arg6: memref<32x4xf32, #tpu.memory_space<vmem>>, %arg7: memref<1x128xf32, #tpu.memory_space<vmem>>, %arg8: memref<56x128xf32, #tpu.memory_space<vmem>>) attributes {dimension_semantics = [#tpu.dimension_semantics<parallel>], iteration_bounds = array<i64: 1>, scalar_prefetch = 0 : i64, scratch_operands = 1 : i64, tpu.core_type = #tpu.core_type<tc>, window_params = [{transform_indices = @transform_0, window_bounds = array<i64: 32, 128>}, {transform_indices = @transform_1, window_bounds = array<i64: 16, 128>}, {transform_indices = @transform_2, window_bounds = array<i64: 4, 3, 128>}, {pipeline_mode = #tpu.pipeline_mode<synchronous>, transform_indices = @transform_3, window_bounds = array<i64: 32, 56>}, {pipeline_mode = #tpu.pipeline_mode<synchronous>, transform_indices = @transform_4, window_bounds = array<i64: 16, 32>}, {pipeline_mode = #tpu.pipeline_mode<synchronous>, transform_indices = @transform_5, window_bounds = array<i64: 32, 4>}, {transform_indices = @transform_6, window_bounds = array<i64: 1, 128>}]} {
    %c0 = arith.constant 0 : index
    %c0_0 = arith.constant 0 : index
    %0 = vector.load %arg4[%c0, %c0_0] : memref<32x56xf32, #tpu.memory_space<vmem>>, vector<32x56xf32>
    %c0_1 = arith.constant 0 : index
    %c0_2 = arith.constant 0 : index
    %1 = vector.load %arg5[%c0_1, %c0_2] : memref<16x32xf32, #tpu.memory_space<vmem>>, vector<16x32xf32>
    %c0_3 = arith.constant 0 : index
    %c0_4 = arith.constant 0 : index
    %2 = vector.load %arg6[%c0_3, %c0_4] : memref<32x4xf32, #tpu.memory_space<vmem>>, vector<32x4xf32>
    %3 = vector.extract_strided_slice %2 {offsets = [0, 0], sizes = [32, 1], strides = [1, 1]} : vector<32x4xf32> to vector<32x1xf32>
    %4 = vector.shape_cast %3 : vector<32x1xf32> to vector<32x1xf32>
    %5 = vector.broadcast %4 : vector<32x1xf32> to vector<32x128xf32>
    %6 = vector.extract_strided_slice %2 {offsets = [0, 1], sizes = [16, 1], strides = [1, 1]} : vector<32x4xf32> to vector<16x1xf32>
    %7 = vector.shape_cast %6 : vector<16x1xf32> to vector<16x1xf32>
    %8 = vector.broadcast %7 : vector<16x1xf32> to vector<16x128xf32>
    %9 = vector.extract_strided_slice %2 {offsets = [0, 2], sizes = [16, 1], strides = [1, 1]} : vector<32x4xf32> to vector<16x1xf32>
    %10 = vector.shape_cast %9 : vector<16x1xf32> to vector<16x1xf32>
    %11 = vector.broadcast %10 : vector<16x1xf32> to vector<16x128xf32>
    %12 = vector.extract_strided_slice %2 {offsets = [0, 3], sizes = [32, 1], strides = [1, 1]} : vector<32x4xf32> to vector<32x1xf32>
    %13 = vector.shape_cast %12 : vector<32x1xf32> to vector<32x1xf32>
    %14 = vector.broadcast %13 : vector<32x1xf32> to vector<32x128xf32>
    %cst = arith.constant 0.000000e+00 : f32
    %15 = vector.broadcast %cst : f32 to vector<56x128xf32>
    %c0_5 = arith.constant 0 : index
    %c0_6 = arith.constant 0 : index
    %16 = vector.load %arg8[%c0_5, %c0_6] : memref<56x128xf32, #tpu.memory_space<vmem>>, vector<56x128xf32>
    tpu.vector_store %arg8[%c0_5, %c0_6], %15 {strides = array<i32>} : memref<56x128xf32, #tpu.memory_space<vmem>>, vector<56x128xf32>,
    %c0_7 = arith.constant 0 : index
    %c0_8 = arith.constant 0 : index
    %17 = vector.load %arg1[%c0_7, %c0_8] : memref<32x128xf32, #tpu.memory_space<vmem>>, vector<32x128xf32>
    %c0_9 = arith.constant 0 : index
    %c0_10 = arith.constant 0 : index
    %18 = vector.load %arg8[%c0_9, %c0_10] : memref<56x128xf32, #tpu.memory_space<vmem>>, vector<32x128xf32>
    tpu.vector_store %arg8[%c0_9, %c0_10], %17 {strides = array<i32>} : memref<56x128xf32, #tpu.memory_space<vmem>>, vector<32x128xf32>,
    %c0_11 = arith.constant 0 : index
    %c0_12 = arith.constant 0 : index
    %19 = vector.load %arg2[%c0_11, %c0_12] : memref<16x128xf32, #tpu.memory_space<vmem>>, vector<16x128xf32>
    %c32 = arith.constant 32 : index
    %c0_13 = arith.constant 0 : index
    %20 = vector.load %arg8[%c32, %c0_13] : memref<56x128xf32, #tpu.memory_space<vmem>>, vector<16x128xf32>
    tpu.vector_store %arg8[%c32, %c0_13], %19 {strides = array<i32>} : memref<56x128xf32, #tpu.memory_space<vmem>>, vector<16x128xf32>,
    %cst_14 = arith.constant 0.000000e+00 : f32
    %21 = vector.broadcast %cst_14 : f32 to vector<1x128xf32>
    %c0_15 = arith.constant 0 : index
    %c0_16 = arith.constant 0 : index
    %c0_17 = arith.constant 0 : index
    %22 = vector.load %arg3[%c0_15, %c0_16, %c0_17] : memref<4x3x128xf32, #tpu.memory_space<vmem>>, vector<1x3x128xf32>
    %23 = vector.shape_cast %22 : vector<1x3x128xf32> to vector<3x128xf32>
    %c48 = arith.constant 48 : index
    %c0_18 = arith.constant 0 : index
    %24 = vector.load %arg8[%c48, %c0_18] : memref<56x128xf32, #tpu.memory_space<vmem>>, vector<3x128xf32>
    tpu.vector_store %arg8[%c48, %c0_18], %23 {strides = array<i32>} : memref<56x128xf32, #tpu.memory_space<vmem>>, vector<3x128xf32>,
    %c0_19 = arith.constant 0 : index
    %c0_20 = arith.constant 0 : index
    %25 = vector.load %arg8[%c0_19, %c0_20] : memref<56x128xf32, #tpu.memory_space<vmem>>, vector<56x128xf32>
    %cst_21 = arith.constant dense<0.000000e+00> : vector<32x128xf32>
    %26 = tpu.matmul %0, %25, %cst_21 {dimension_numbers = #tpu.dot_dimension_numbers<[1], [0], [0], [1], [0, 0, 1, 1], [], []>} : vector<32x56xf32>, vector<56x128xf32>, vector<32x128xf32> -> vector<32x128xf32>
    %27 = arith.addf %26, %5 : vector<32x128xf32>
    %28 = math.tanh %27 : vector<32x128xf32>
    %cst_22 = arith.constant dense<0.000000e+00> : vector<16x128xf32>
    %29 = tpu.matmul %1, %28, %cst_22 {dimension_numbers = #tpu.dot_dimension_numbers<[1], [0], [0], [1], [0, 0, 1, 1], [], []>} : vector<16x32xf32>, vector<32x128xf32>, vector<16x128xf32> -> vector<16x128xf32>
    %30 = arith.addf %29, %8 : vector<16x128xf32>
    %31 = math.tanh %30 : vector<16x128xf32>
    %32 = arith.mulf %14, %28 : vector<32x128xf32>
    %cst_23 = arith.constant dense<0.000000e+00> : vector<128xf32>
    %33 = vector.multi_reduction <add>, %32, %cst_23 [0] : vector<32x128xf32> to vector<128xf32>
    %34 = vector.shape_cast %33 : vector<128xf32> to vector<1x128xf32>
    %35 = arith.mulf %11, %31 : vector<16x128xf32>
    %cst_24 = arith.constant dense<0.000000e+00> : vector<128xf32>
    %36 = vector.multi_reduction <add>, %35, %cst_24 [0] : vector<16x128xf32> to vector<128xf32>
    %37 = vector.shape_cast %36 : vector<128xf32> to vector<1x128xf32>
    %38 = arith.addf %34, %37 : vector<1x128xf32>
    %39 = arith.addf %21, %38 : vector<1x128xf32>
    %c0_25 = arith.constant 0 : index
    %c0_26 = arith.constant 0 : index
    %40 = vector.load %arg8[%c0_25, %c0_26] : memref<56x128xf32, #tpu.memory_space<vmem>>, vector<32x128xf32>
    tpu.vector_store %arg8[%c0_25, %c0_26], %28 {strides = array<i32>} : memref<56x128xf32, #tpu.memory_space<vmem>>, vector<32x128xf32>,
    %c32_27 = arith.constant 32 : index
    %c0_28 = arith.constant 0 : index
    %41 = vector.load %arg8[%c32_27, %c0_28] : memref<56x128xf32, #tpu.memory_space<vmem>>, vector<16x128xf32>
    tpu.vector_store %arg8[%c32_27, %c0_28], %31 {strides = array<i32>} : memref<56x128xf32, #tpu.memory_space<vmem>>, vector<16x128xf32>,
    %c1 = arith.constant 1 : index
    %c0_29 = arith.constant 0 : index
    %c0_30 = arith.constant 0 : index
    %42 = vector.load %arg3[%c1, %c0_29, %c0_30] : memref<4x3x128xf32, #tpu.memory_space<vmem>>, vector<1x3x128xf32>
    %43 = vector.shape_cast %42 : vector<1x3x128xf32> to vector<3x128xf32>
    %c48_31 = arith.constant 48 : index
    %c0_32 = arith.constant 0 : index
    %44 = vector.load %arg8[%c48_31, %c0_32] : memref<56x128xf32, #tpu.memory_space<vmem>>, vector<3x128xf32>
    tpu.vector_store %arg8[%c48_31, %c0_32], %43 {strides = array<i32>} : memref<56x128xf32, #tpu.memory_space<vmem>>, vector<3x128xf32>,
    %c0_33 = arith.constant 0 : index
    %c0_34 = arith.constant 0 : index
    %45 = vector.load %arg8[%c0_33, %c0_34] : memref<56x128xf32, #tpu.memory_space<vmem>>, vector<56x128xf32>
    %cst_35 = arith.constant dense<0.000000e+00> : vector<32x128xf32>
    %46 = tpu.matmul %0, %45, %cst_35 {dimension_numbers = #tpu.dot_dimension_numbers<[1], [0], [0], [1], [0, 0, 1, 1], [], []>} : vector<32x56xf32>, vector<56x128xf32>, vector<32x128xf32> -> vector<32x128xf32>
    %47 = arith.addf %46, %5 : vector<32x128xf32>
    %48 = math.tanh %47 : vector<32x128xf32>
    %cst_36 = arith.constant dense<0.000000e+00> : vector<16x128xf32>
    %49 = tpu.matmul %1, %48, %cst_36 {dimension_numbers = #tpu.dot_dimension_numbers<[1], [0], [0], [1], [0, 0, 1, 1], [], []>} : vector<16x32xf32>, vector<32x128xf32>, vector<16x128xf32> -> vector<16x128xf32>
    %50 = arith.addf %49, %8 : vector<16x128xf32>
    %51 = math.tanh %50 : vector<16x128xf32>
    %52 = arith.mulf %14, %48 : vector<32x128xf32>
    %cst_37 = arith.constant dense<0.000000e+00> : vector<128xf32>
    %53 = vector.multi_reduction <add>, %52, %cst_37 [0] : vector<32x128xf32> to vector<128xf32>
    %54 = vector.shape_cast %53 : vector<128xf32> to vector<1x128xf32>
    %55 = arith.mulf %11, %51 : vector<16x128xf32>
    %cst_38 = arith.constant dense<0.000000e+00> : vector<128xf32>
    %56 = vector.multi_reduction <add>, %55, %cst_38 [0] : vector<16x128xf32> to vector<128xf32>
    %57 = vector.shape_cast %56 : vector<128xf32> to vector<1x128xf32>
    %58 = arith.addf %54, %57 : vector<1x128xf32>
    %59 = arith.addf %39, %58 : vector<1x128xf32>
    %c0_39 = arith.constant 0 : index
    %c0_40 = arith.constant 0 : index
    %60 = vector.load %arg8[%c0_39, %c0_40] : memref<56x128xf32, #tpu.memory_space<vmem>>, vector<32x128xf32>
    tpu.vector_store %arg8[%c0_39, %c0_40], %48 {strides = array<i32>} : memref<56x128xf32, #tpu.memory_space<vmem>>, vector<32x128xf32>,
    %c32_41 = arith.constant 32 : index
    %c0_42 = arith.constant 0 : index
    %61 = vector.load %arg8[%c32_41, %c0_42] : memref<56x128xf32, #tpu.memory_space<vmem>>, vector<16x128xf32>
    tpu.vector_store %arg8[%c32_41, %c0_42], %51 {strides = array<i32>} : memref<56x128xf32, #tpu.memory_space<vmem>>, vector<16x128xf32>,
    %c2 = arith.constant 2 : index
    %c0_43 = arith.constant 0 : index
    %c0_44 = arith.constant 0 : index
    %62 = vector.load %arg3[%c2, %c0_43, %c0_44] : memref<4x3x128xf32, #tpu.memory_space<vmem>>, vector<1x3x128xf32>
    %63 = vector.shape_cast %62 : vector<1x3x128xf32> to vector<3x128xf32>
    %c48_45 = arith.constant 48 : index
    %c0_46 = arith.constant 0 : index
    %64 = vector.load %arg8[%c48_45, %c0_46] : memref<56x128xf32, #tpu.memory_space<vmem>>, vector<3x128xf32>
    tpu.vector_store %arg8[%c48_45, %c0_46], %63 {strides = array<i32>} : memref<56x128xf32, #tpu.memory_space<vmem>>, vector<3x128xf32>,
    %c0_47 = arith.constant 0 : index
    %c0_48 = arith.constant 0 : index
    %65 = vector.load %arg8[%c0_47, %c0_48] : memref<56x128xf32, #tpu.memory_space<vmem>>, vector<56x128xf32>
    %cst_49 = arith.constant dense<0.000000e+00> : vector<32x128xf32>
    %66 = tpu.matmul %0, %65, %cst_49 {dimension_numbers = #tpu.dot_dimension_numbers<[1], [0], [0], [1], [0, 0, 1, 1], [], []>} : vector<32x56xf32>, vector<56x128xf32>, vector<32x128xf32> -> vector<32x128xf32>
    %67 = arith.addf %66, %5 : vector<32x128xf32>
    %68 = math.tanh %67 : vector<32x128xf32>
    %cst_50 = arith.constant dense<0.000000e+00> : vector<16x128xf32>
    %69 = tpu.matmul %1, %68, %cst_50 {dimension_numbers = #tpu.dot_dimension_numbers<[1], [0], [0], [1], [0, 0, 1, 1], [], []>} : vector<16x32xf32>, vector<32x128xf32>, vector<16x128xf32> -> vector<16x128xf32>
    %70 = arith.addf %69, %8 : vector<16x128xf32>
    %71 = math.tanh %70 : vector<16x128xf32>
    %72 = arith.mulf %14, %68 : vector<32x128xf32>
    %cst_51 = arith.constant dense<0.000000e+00> : vector<128xf32>
    %73 = vector.multi_reduction <add>, %72, %cst_51 [0] : vector<32x128xf32> to vector<128xf32>
    %74 = vector.shape_cast %73 : vector<128xf32> to vector<1x128xf32>
    %75 = arith.mulf %11, %71 : vector<16x128xf32>
    %cst_52 = arith.constant dense<0.000000e+00> : vector<128xf32>
    %76 = vector.multi_reduction <add>, %75, %cst_52 [0] : vector<16x128xf32> to vector<128xf32>
    %77 = vector.shape_cast %76 : vector<128xf32> to vector<1x128xf32>
    %78 = arith.addf %74, %77 : vector<1x128xf32>
    %79 = arith.addf %59, %78 : vector<1x128xf32>
    %c0_53 = arith.constant 0 : index
    %c0_54 = arith.constant 0 : index
    %80 = vector.load %arg8[%c0_53, %c0_54] : memref<56x128xf32, #tpu.memory_space<vmem>>, vector<32x128xf32>
    tpu.vector_store %arg8[%c0_53, %c0_54], %68 {strides = array<i32>} : memref<56x128xf32, #tpu.memory_space<vmem>>, vector<32x128xf32>,
    %c32_55 = arith.constant 32 : index
    %c0_56 = arith.constant 0 : index
    %81 = vector.load %arg8[%c32_55, %c0_56] : memref<56x128xf32, #tpu.memory_space<vmem>>, vector<16x128xf32>
    tpu.vector_store %arg8[%c32_55, %c0_56], %71 {strides = array<i32>} : memref<56x128xf32, #tpu.memory_space<vmem>>, vector<16x128xf32>,
    %c3 = arith.constant 3 : index
    %c0_57 = arith.constant 0 : index
    %c0_58 = arith.constant 0 : index
    %82 = vector.load %arg3[%c3, %c0_57, %c0_58] : memref<4x3x128xf32, #tpu.memory_space<vmem>>, vector<1x3x128xf32>
    %83 = vector.shape_cast %82 : vector<1x3x128xf32> to vector<3x128xf32>
    %c48_59 = arith.constant 48 : index
    %c0_60 = arith.constant 0 : index
    %84 = vector.load %arg8[%c48_59, %c0_60] : memref<56x128xf32, #tpu.memory_space<vmem>>, vector<3x128xf32>
    tpu.vector_store %arg8[%c48_59, %c0_60], %83 {strides = array<i32>} : memref<56x128xf32, #tpu.memory_space<vmem>>, vector<3x128xf32>,
    %c0_61 = arith.constant 0 : index
    %c0_62 = arith.constant 0 : index
    %85 = vector.load %arg8[%c0_61, %c0_62] : memref<56x128xf32, #tpu.memory_space<vmem>>, vector<56x128xf32>
    %cst_63 = arith.constant dense<0.000000e+00> : vector<32x128xf32>
    %86 = tpu.matmul %0, %85, %cst_63 {dimension_numbers = #tpu.dot_dimension_numbers<[1], [0], [0], [1], [0, 0, 1, 1], [], []>} : vector<32x56xf32>, vector<56x128xf32>, vector<32x128xf32> -> vector<32x128xf32>
    %87 = arith.addf %86, %5 : vector<32x128xf32>
    %88 = math.tanh %87 : vector<32x128xf32>
    %cst_64 = arith.constant dense<0.000000e+00> : vector<16x128xf32>
    %89 = tpu.matmul %1, %88, %cst_64 {dimension_numbers = #tpu.dot_dimension_numbers<[1], [0], [0], [1], [0, 0, 1, 1], [], []>} : vector<16x32xf32>, vector<32x128xf32>, vector<16x128xf32> -> vector<16x128xf32>
    %90 = arith.addf %89, %8 : vector<16x128xf32>
    %91 = math.tanh %90 : vector<16x128xf32>
    %92 = arith.mulf %14, %88 : vector<32x128xf32>
    %cst_65 = arith.constant dense<0.000000e+00> : vector<128xf32>
    %93 = vector.multi_reduction <add>, %92, %cst_65 [0] : vector<32x128xf32> to vector<128xf32>
    %94 = vector.shape_cast %93 : vector<128xf32> to vector<1x128xf32>
    %95 = arith.mulf %11, %91 : vector<16x128xf32>
    %cst_66 = arith.constant dense<0.000000e+00> : vector<128xf32>
    %96 = vector.multi_reduction <add>, %95, %cst_66 [0] : vector<16x128xf32> to vector<128xf32>
    %97 = vector.shape_cast %96 : vector<128xf32> to vector<1x128xf32>
    %98 = arith.addf %94, %97 : vector<1x128xf32>
    %99 = arith.addf %79, %98 : vector<1x128xf32>
    %c0_67 = arith.constant 0 : index
    %c0_68 = arith.constant 0 : index
    %100 = vector.load %arg7[%c0_67, %c0_68] : memref<1x128xf32, #tpu.memory_space<vmem>>, vector<1x128xf32>
    tpu.vector_store %arg7[%c0_67, %c0_68], %99 {strides = array<i32>} : memref<1x128xf32, #tpu.memory_space<vmem>>, vector<1x128xf32>,
    return
  }
  func.func @transform_0(%arg0: i32) -> (i32, i32) {
    %c0_i32 = arith.constant 0 : i32
    %c0_i32_0 = arith.constant 0 : i32
    return %c0_i32, %arg0 : i32, i32
  }
  func.func @transform_1(%arg0: i32) -> (i32, i32) {
    %c0_i32 = arith.constant 0 : i32
    %c0_i32_0 = arith.constant 0 : i32
    return %c0_i32, %arg0 : i32, i32
  }
  func.func @transform_2(%arg0: i32) -> (i32, i32, i32) {
    %c0_i32 = arith.constant 0 : i32
    %c0_i32_0 = arith.constant 0 : i32
    %c0_i32_1 = arith.constant 0 : i32
    return %c0_i32, %c0_i32_0, %arg0 : i32, i32, i32
  }
  func.func @transform_3(%arg0: i32) -> (i32, i32) {
    %c0_i32 = arith.constant 0 : i32
    %c0_i32_0 = arith.constant 0 : i32
    %c0_i32_1 = arith.constant 0 : i32
    return %c0_i32, %c0_i32_0 : i32, i32
  }
  func.func @transform_4(%arg0: i32) -> (i32, i32) {
    %c0_i32 = arith.constant 0 : i32
    %c0_i32_0 = arith.constant 0 : i32
    %c0_i32_1 = arith.constant 0 : i32
    return %c0_i32, %c0_i32_0 : i32, i32
  }
  func.func @transform_5(%arg0: i32) -> (i32, i32) {
    %c0_i32 = arith.constant 0 : i32
    %c0_i32_0 = arith.constant 0 : i32
    %c0_i32_1 = arith.constant 0 : i32
    return %c0_i32, %c0_i32_0 : i32, i32
  }
  func.func @transform_6(%arg0: i32) -> (i32, i32) {
    %c0_i32 = arith.constant 0 : i32
    %c0_i32_0 = arith.constant 0 : i32
    return %c0_i32, %arg0 : i32, i32
  }
}

</mosaic_0001>

<llo_original>
// kernel: squeeze.32
$region0: #{squeeze.32}
  %s0 = inlined_call_operand.vmem [shape: f32[128], index: 0, kind: input, shape index: {}]
  %s1 = inlined_call_operand.vmem [shape: f32[2,64], index: 1, kind: output, shape index: {}]
  $region1: #{squeeze.32} parent=0
    #allocation0 [shape = 'u8[4096]{0}', space=vmem, size = 0x1000, scoped, tag = 'scoped mem for output reshape']
    #allocation1 [shape = 'u8[4096]{0}', space=vmem, size = 0x1000, scoped, tag = 'scoped mem for input reshape']
    %s3 = sshllo.u32 0, 1
    %v4 = vld [vmem:[%s0] sm:%s3]
    %5 = vst [vmem:[#allocation1] sm:%s3] %v4
    %v6 = vld [vmem:[#allocation1] sm:$0x1]
    %vm7 = vcmask 523264
    %8 = vst.msk [vmem:[#allocation0] sm:$0x1] %vm7, %v6
    %v9 = vld [vmem:[#allocation1] sm:$0x1]
    %10 = vrot.lane.b32.xlu0 %v9, 64
    %v11 = vpop.permute.xlu0 %10
    %vm12 = vcmask 523264
    %s13 = scalar_lea.vmem [#allocation0], 1
    %14 = vst.msk [vmem:[%s13] sm:$0x1] %vm12, %v11
    %s16 = sshllo.u32 0, 2
    %v18 = vld [vmem:[#allocation0] sm:%s16]
    %s19 = sshllo.u32 0, 2
    %20 = vst [vmem:[%s1] sm:%s19] %v18

// kernel: mpc_planner_forward.2
$region0: #{mpc_planner_forward.2}
  #allocation0 [shape = 'u32[]', space=smem, size = 0x4, offset = 0x4, fixed_abs, tag = 'smem constant byte address 0x4 - core index']
  #allocation1 [shape = 'u32[144,128]{1,0:T(1,128)}', space=vmem, size = 0x12000, scoped, tag = 'internal scratch']
  #allocation2 [shape = 'f32[56,128]{1,0:T(8,128)}', space=vmem, size = 0x7000, scoped, tag = 'scratch operand']
  %s0 = inlined_call_operand.vmem [shape: f32[32,128], index: 0, kind: input, shape index: {}]
  %s1 = inlined_call_operand.vmem [shape: f32[16,128], index: 1, kind: input, shape index: {}]
  %s2 = inlined_call_operand.vmem [shape: f32[4,3,128], index: 2, kind: input, shape index: {}]
  %s3 = inlined_call_operand.vmem [shape: f32[32,56], index: 3, kind: input, shape index: {}]
  %s4 = inlined_call_operand.vmem [shape: f32[16,32], index: 4, kind: input, shape index: {}]
  %s5 = inlined_call_operand.vmem [shape: f32[32,4], index: 5, kind: input, shape index: {}]
  %s6 = inlined_call_operand.vmem [shape: f32[1,128], index: 6, kind: output, shape index: {}]
  %s7 = sld [smem:[#allocation0]]
  $region34: #{mpc_planner_forward.2} parent=0
    _
  %s9 = ssub.s32 1, %s7
  %s10 = scalar_select 0, %s9, %s7
  // Predicated region
  $region2: #{mpc_planner_forward.2} parent=0 // pred_check
    _
  $region3: #{mpc_planner_forward.2} parent=0 // pred_check_branch
    %12 = sbr.rel (0) target = $region5
  $region4: #{mpc_planner_forward.2} parent=0 // pred_region
    _
  $region5: #{mpc_planner_forward.2} parent=0 // pred_fallthru
    _
  // Predicated region
  $region6: #{mpc_planner_forward.2} parent=0 // pred_check
    _
  $region7: #{mpc_planner_forward.2} parent=0 // pred_check_branch
    %14 = sbr.rel (0) target = $region9
  $region8: #{mpc_planner_forward.2} parent=0 // pred_region
    _
  $region9: #{mpc_planner_forward.2} parent=0 // pred_fallthru
    _
  // Predicated region
  $region10: #{mpc_planner_forward.2} parent=0 // pred_check
    _
  $region11: #{mpc_planner_forward.2} parent=0 // pred_check_branch
    %16 = sbr.rel (0) target = $region13
  $region12: #{mpc_planner_forward.2} parent=0 // pred_region
    _
  $region13: #{mpc_planner_forward.2} parent=0 // pred_fallthru
    _
  // Predicated region
  $region14: #{mpc_planner_forward.2} parent=0 // pred_check
    _
  $region15: #{mpc_planner_forward.2} parent=0 // pred_check_branch
    %18 = sbr.rel (0) target = $region17
  $region16: #{mpc_planner_forward.2} parent=0 // pred_region
    _
  $region17: #{mpc_planner_forward.2} parent=0 // pred_fallthru
    _
  // Predicated region
  $region18: #{mpc_planner_forward.2} parent=0 // pred_check
    _
  $region19: #{mpc_planner_forward.2} parent=0 // pred_check_branch
    %20 = sbr.rel (0) target = $region21
  $region20: #{mpc_planner_forward.2} parent=0 // pred_region
    _
  $region21: #{mpc_planner_forward.2} parent=0 // pred_fallthru
    _
  // Predicated region
  $region22: #{mpc_planner_forward.2} parent=0 // pred_check
    _
  $region23: #{mpc_planner_forward.2} parent=0 // pred_check_branch
    %22 = sbr.rel (0) target = $region25
  $region24: #{mpc_planner_forward.2} parent=0 // pred_region
    _
  $region25: #{mpc_planner_forward.2} parent=0 // pred_fallthru
    _
  %v23 = vld [vmem:[%s3] sm:$0xff]
  %v24 = vld [vmem:[%s3 + $0x8] sm:$0xff]
  %v25 = vld [vmem:[%s3 + $0x10] sm:$0xff]
  %v26 = vld [vmem:[%s3 + $0x18] sm:$0xff]
  %v27 = vld [vmem:[%s4] sm:$0xff]
  %v28 = vld [vmem:[%s4 + $0x8] sm:$0xff]
  %v29 = vld [vmem:[%s5] sm:$0xff]
  %v30 = vld [vmem:[%s5 + $0x8] sm:$0xff]
  %v31 = vld [vmem:[%s5 + $0x10] sm:$0xff]
  %v32 = vld [vmem:[%s5 + $0x18] sm:$0xff]
  %34 = vset.pattern.permute.xlu0 0
  %35 = vperm.xlu0 %34, %v29
  %v36 = vpop.permute.xlu0 %35
  %39 = vset.pattern.permute.xlu0 0
  %40 = vperm.xlu0 %39, %v30
  %v41 = vpop.permute.xlu0 %40
  %44 = vset.pattern.permute.xlu0 0
  %45 = vperm.xlu0 %44, %v31
  %v46 = vpop.permute.xlu0 %45
  %49 = vset.pattern.permute.xlu0 0
  %50 = vperm.xlu0 %49, %v32
  %v51 = vpop.permute.xlu0 %50
  %53 = vset.pattern.permute.xlu0 1
  %54 = vperm.xlu0 %53, %v29
  %v55 = vpop.permute.xlu0 %54
  %57 = vset.pattern.permute.xlu0 1
  %58 = vperm.xlu0 %57, %v30
  %v59 = vpop.permute.xlu0 %58
  %61 = vset.pattern.permute.xlu0 2
  %62 = vperm.xlu0 %61, %v29
  %v63 = vpop.permute.xlu0 %62
  %65 = vset.pattern.permute.xlu0 2
  %66 = vperm.xlu0 %65, %v30
  %v67 = vpop.permute.xlu0 %66
  %69 = vset.pattern.permute.xlu0 3
  %70 = vperm.xlu0 %69, %v29
  %v71 = vpop.permute.xlu0 %70
  %73 = vset.pattern.permute.xlu0 3
  %74 = vperm.xlu0 %73, %v30
  %v75 = vpop.permute.xlu0 %74
  %77 = vset.pattern.permute.xlu0 3
  %78 = vperm.xlu0 %77, %v31
  %v79 = vpop.permute.xlu0 %78
  %81 = vset.pattern.permute.xlu0 3
  %82 = vperm.xlu0 %81, %v32
  %v83 = vpop.permute.xlu0 %82
  %85 = vst [vmem:[#allocation2] sm:$0xff] 0.0
  %86 = vst [vmem:[#allocation2 + $0x8] sm:$0xff] 0.0
  %87 = vst [vmem:[#allocation2 + $0x10] sm:$0xff] 0.0
  %88 = vst [vmem:[#allocation2 + $0x18] sm:$0xff] 0.0
  %89 = vst [vmem:[#allocation2 + $0x20] sm:$0xff] 0.0
  %90 = vst [vmem:[#allocation2 + $0x28] sm:$0xff] 0.0
  %91 = vst [vmem:[#allocation2 + $0x30] sm:$0xff] 0.0
  %v92 = vld [vmem:[%s0] sm:$0xff]
  %v93 = vld [vmem:[%s0 + $0x8] sm:$0xff]
  %v94 = vld [vmem:[%s0 + $0x10] sm:$0xff]
  %v95 = vld [vmem:[%s0 + $0x18] sm:$0xff]
  %96 = vst [vmem:[#allocation2] sm:$0xff] %v92
  %97 = vst [vmem:[#allocation2 + $0x8] sm:$0xff] %v93
  %98 = vst [vmem:[#allocation2 + $0x10] sm:$0xff] %v94
  %99 = vst [vmem:[#allocation2 + $0x18] sm:$0xff] %v95
  %v100 = vld [vmem:[%s1] sm:$0xff]
  %v101 = vld [vmem:[%s1 + $0x8] sm:$0xff]
  %102 = vst [vmem:[#allocation2 + $0x20] sm:$0xff] %v100
  %103 = vst [vmem:[#allocation2 + $0x28] sm:$0xff] %v101
  %v104 = vld [vmem:[%s2] sm:$0x7]
  %105 = vst [vmem:[#allocation2 + $0x30] sm:$0x7] %v104
  %v106 = vld [vmem:[#allocation2] sm:$0xff]
  %v107 = vld [vmem:[#allocation2 + $0x8] sm:$0xff]
  %v108 = vld [vmem:[#allocation2 + $0x10] sm:$0xff]
  %v109 = vld [vmem:[#allocation2 + $0x18] sm:$0xff]
  %v110 = vld [vmem:[#allocation2 + $0x20] sm:$0xff]
  %v111 = vld [vmem:[#allocation2 + $0x28] sm:$0xff]
  %v112 = vld [vmem:[#allocation2 + $0x30] sm:$0xff]
  %vm113 = vcmask 457728
  %v115 = vsel %vm113, %v23, 0
  %v118 = vsel %vm113, %v24, 0
  %v121 = vsel %vm113, %v25, 0
  %v124 = vsel %vm113, %v26, 0
  %126 = vmatprep.subr.mxu0 0.0
  %127 = vmatpush1.msra.mxu0 %v106
  %128 = vmatprep.subr.mxu0 0.0
  %129 = vmatpush1.msra.mxu0 %v107
  %130 = vmatprep.subr.mxu0 0.0
  %131 = vmatpush1.msra.mxu0 %v108
  %132 = vmatprep.subr.mxu0 0.0
  %133 = vmatpush1.msra.mxu0 %v109
  %134 = vmatprep.subr.mxu0 0.0
  %135 = vmatpush1.msra.mxu0 %v110
  %136 = vmatprep.subr.mxu0 0.0
  %137 = vmatpush1.msra.mxu0 %v111
  %138 = vmatprep.subr.mxu0 0.0
  %139 = vmatpush1.msra.mxu0 %v112
  %140 = vmatprep.subr.mxu0 0.0
  %141 = vmatpush1.msra.mxu0 0.0
  %142 = vmatprep.subr.mxu0 0.0
  %143 = vmatpush1.msra.mxu0 0.0
  %144 = vmatprep.subr.mxu0 0.0
  %145 = vmatpush1.msra.mxu0 0.0
  %146 = vmatprep.subr.mxu0 0.0
  %147 = vmatpush1.msra.mxu0 0.0
  %148 = vmatprep.subr.mxu0 0.0
  %149 = vmatpush1.msra.mxu0 0.0
  %150 = vmatprep.subr.mxu0 0.0
  %151 = vmatpush1.msra.mxu0 0.0
  %152 = vmatprep.subr.mxu0 0.0
  %153 = vmatpush1.msra.mxu0 0.0
  %154 = vmatprep.subr.mxu0 0.0
  %155 = vmatpush1.msra.mxu0 0.0
  %156 = vmatprep.subr.mxu0 0.0
  %157 = vmatpush1.msra.mxu0 0.0
  %158 = vmatprep.subr.mxu0 0.0
  %159 = vmatpush1.msra.mxu0 0.0
  %160 = vmatprep.subr.mxu0 0.0
  %161 = vmatpush1.msra.mxu0 0.0
  %162 = vmatprep.subr.mxu0 0.0
  %163 = vmatpush1.msra.mxu0 0.0
  %164 = vmatprep.subr.mxu0 0.0
  %165 = vmatpush1.msra.mxu0 0.0
  %166 = vmatprep.subr.mxu0 0.0
  %167 = vmatpush1.msra.mxu0 0.0
  %168 = vmatprep.subr.mxu0 0.0
  %169 = vmatpush1.msra.mxu0 0.0
  %170 = vmatprep.subr.mxu0 0.0
  %171 = vmatpush1.msra.mxu0 0.0
  %172 = vmatprep.subr.mxu0 0.0
  %173 = vmatpush1.msra.mxu0 0.0
  %174 = vmatprep.subr.mxu0 0.0
  %175 = vmatpush1.msra.mxu0 0.0
  %176 = vmatprep.subr.mxu0 0.0
  %177 = vmatpush1.msra.mxu0 0.0
  %178 = vmatprep.subr.mxu0 0.0
  %179 = vmatpush1.msra.mxu0 0.0
  %180 = vmatprep.subr.mxu0 0.0
  %181 = vmatpush1.msra.mxu0 0.0
  %182 = vmatprep.subr.mxu0 0.0
  %183 = vmatpush1.msra.mxu0 0.0
  %184 = vmatprep.subr.mxu0 0.0
  %185 = vmatpush1.msra.mxu0 0.0
  %186 = vmatprep.subr.mxu0 0.0
  %187 = vmatpush1.msra.mxu0 0.0
  %188 = vmatprep.subr.mxu0 0.0
  %189 = vmatpush1.msra.mxu0 0.0
  %190 = vmatprep.mubr.f32.mxu0 0.0
  %191 = vmatmul.mubr.f32.gmra.mrb[0].mxu0 %v115
  %v192 = vpop.f32.mrb[0].mxu0
  %v193 = vadd.f32 %v36, %v192
  %v194 = vpop.f32.mrb[0].mxu0
  %195 = vmatprep.mubr.f32.mxu0 0.0
  %196 = vmatmul.mubr.f32.gmra.mrb[0].mxu0 %v118
  %v197 = vpop.f32.mrb[0].mxu0
  %v198 = vadd.f32 %v41, %v197
  %v199 = vpop.f32.mrb[0].mxu0
  %200 = vmatprep.mubr.f32.mxu0 0.0
  %201 = vmatmul.mubr.f32.gmra.mrb[0].mxu0 %v121
  %v202 = vpop.f32.mrb[0].mxu0
  %v203 = vadd.f32 %v46, %v202
  %v204 = vpop.f32.mrb[0].mxu0
  %205 = vmatprep.mubr.f32.mxu0 0.0
  %206 = vmatmul.mubr.f32.gmra.mrb[0].mxu0 %v124
  %v207 = vpop.f32.mrb[0].mxu0
  %v208 = vadd.f32 %v51, %v207
  %v209 = vpop.f32.mrb[0].mxu0
  %210 = vdwg.mxu0
  %v211 = vtanh.pop %v193
  %v212 = vtanh.pop %v198
  %v213 = vtanh.pop %v203
  %v214 = vtanh.pop %v208
  %vm215 = vcmask 261120
  %v217 = vsel %vm215, %v27, 0
  %v220 = vsel %vm215, %v28, 0
  %222 = vmatprep.subr.mxu0 0.0
  %223 = vmatpush1.msra.mxu0 %v211
  %224 = vmatprep.subr.mxu0 0.0
  %225 = vmatpush1.msra.mxu0 %v212
  %226 = vmatprep.subr.mxu0 0.0
  %227 = vmatpush1.msra.mxu0 %v213
  %228 = vmatprep.subr.mxu0 0.0
  %229 = vmatpush1.msra.mxu0 %v214
  %230 = vmatprep.subr.mxu0 0.0
  %231 = vmatpush1.msra.mxu0 0.0
  %232 = vmatprep.subr.mxu0 0.0
  %233 = vmatpush1.msra.mxu0 0.0
  %234 = vmatprep.subr.mxu0 0.0
  %235 = vmatpush1.msra.mxu0 0.0
  %236 = vmatprep.subr.mxu0 0.0
  %237 = vmatpush1.msra.mxu0 0.0
  %238 = vmatprep.subr.mxu0 0.0
  %239 = vmatpush1.msra.mxu0 0.0
  %240 = vmatprep.subr.mxu0 0.0
  %241 = vmatpush1.msra.mxu0 0.0
  %242 = vmatprep.subr.mxu0 0.0
  %243 = vmatpush1.msra.mxu0 0.0
  %244 = vmatprep.subr.mxu0 0.0
  %245 = vmatpush1.msra.mxu0 0.0
  %246 = vmatprep.subr.mxu0 0.0
  %247 = vmatpush1.msra.mxu0 0.0
  %248 = vmatprep.subr.mxu0 0.0
  %249 = vmatpush1.msra.mxu0 0.0
  %250 = vmatprep.subr.mxu0 0.0
  %251 = vmatpush1.msra.mxu0 0.0
  %252 = vmatprep.subr.mxu0 0.0
  %253 = vmatpush1.msra.mxu0 0.0
  %254 = vmatprep.subr.mxu0 0.0
  %255 = vmatpush1.msra.mxu0 0.0
  %256 = vmatprep.subr.mxu0 0.0
  %257 = vmatpush1.msra.mxu0 0.0
  %258 = vmatprep.subr.mxu0 0.0
  %259 = vmatpush1.msra.mxu0 0.0
  %260 = vmatprep.subr.mxu0 0.0
  %261 = vmatpush1.msra.mxu0 0.0
  %262 = vmatprep.subr.mxu0 0.0
  %263 = vmatpush1.msra.mxu0 0.0
  %264 = vmatprep.subr.mxu0 0.0
  %265 = vmatpush1.msra.mxu0 0.0
  %266 = vmatprep.subr.mxu0 0.0
  %267 = vmatpush1.msra.mxu0 0.0
  %268 = vmatprep.subr.mxu0 0.0
  %269 = vmatpush1.msra.mxu0 0.0
  %270 = vmatprep.subr.mxu0 0.0
  %271 = vmatpush1.msra.mxu0 0.0
  %272 = vmatprep.subr.mxu0 0.0
  %273 = vmatpush1.msra.mxu0 0.0
  %274 = vmatprep.subr.mxu0 0.0
  %275 = vmatpush1.msra.mxu0 0.0
  %276 = vmatprep.subr.mxu0 0.0
  %277 = vmatpush1.msra.mxu0 0.0
  %278 = vmatprep.subr.mxu0 0.0
  %279 = vmatpush1.msra.mxu0 0.0
  %280 = vmatprep.subr.mxu0 0.0
  %281 = vmatpush1.msra.mxu0 0.0
  %282 = vmatprep.subr.mxu0 0.0
  %283 = vmatpush1.msra.mxu0 0.0
  %284 = vmatprep.subr.mxu0 0.0
  %285 = vmatpush1.msra.mxu0 0.0
  %286 = vmatprep.mubr.f32.mxu0 0.0
  %287 = vmatmul.mubr.f32.gmra.mrb[0].mxu0 %v217
  %v288 = vpop.f32.mrb[0].mxu0
  %v289 = vadd.f32 %v55, %v288
  %v290 = vpop.f32.mrb[0].mxu0
  %291 = vmatprep.mubr.f32.mxu0 0.0
  %292 = vmatmul.mubr.f32.gmra.mrb[0].mxu0 %v220
  %v293 = vpop.f32.mrb[0].mxu0
  %v294 = vadd.f32 %v59, %v293
  %v295 = vpop.f32.mrb[0].mxu0
  %296 = vdwg.mxu0
  %v297 = vtanh.pop %v289
  %v298 = vtanh.pop %v294
  %v299 = vmul.f32 %v71, %v211
  %v300 = vmul.f32 %v75, %v212
  %v301 = vmul.f32 %v79, %v213
  %v302 = vmul.f32 %v83, %v214
  %v303 = vadd.f32 %v299, %v300
  %v304 = vadd.f32 %v303, %v301
  %v305 = vadd.f32 %v304, %v302
  %v306 = vrot.slane %v305, 4
  %v307 = vadd.f32 %v305, %v306
  %v308 = vrot.slane %v307, 2
  %v309 = vadd.f32 %v307, %v308
  %v310 = vrot.slane %v309, 1
  %v311 = vadd.f32 %v309, %v310
  %v312 = vmul.f32 %v63, %v297
  %v313 = vmul.f32 %v67, %v298
  %v314 = vadd.f32 %v312, %v313
  %v315 = vrot.slane %v314, 4
  %v316 = vadd.f32 %v314, %v315
  %v317 = vrot.slane %v316, 2
  %v318 = vadd.f32 %v316, %v317
  %v319 = vrot.slane %v318, 1
  %v320 = vadd.f32 %v318, %v319
  %v321 = vadd.f32 %v311, %v320
  %v322 = vadd.f32 %v321, 0.0
  %323 = vst [vmem:[#allocation2] sm:$0xff] %v211
  %324 = vst [vmem:[#allocation2 + $0x8] sm:$0xff] %v212
  %325 = vst [vmem:[#allocation2 + $0x10] sm:$0xff] %v213
  %326 = vst [vmem:[#allocation2 + $0x18] sm:$0xff] %v214
  %327 = vst [vmem:[#allocation2 + $0x20] sm:$0xff] %v297
  %328 = vst [vmem:[#allocation2 + $0x28] sm:$0xff] %v298
  %s329 = scalar_lea.vmem %s2, 4
  %v330 = vld [vmem:[%s329] sm:$0x7]
  %331 = vst [vmem:[#allocation2 + $0x30] sm:$0x7] %v330
  %v332 = vld [vmem:[#allocation2] sm:$0xff]
  %v333 = vld [vmem:[#allocation2 + $0x8] sm:$0xff]
  %v334 = vld [vmem:[#allocation2 + $0x10] sm:$0xff]
  %v335 = vld [vmem:[#allocation2 + $0x18] sm:$0xff]
  %v336 = vld [vmem:[#allocation2 + $0x20] sm:$0xff]
  %v337 = vld [vmem:[#allocation2 + $0x28] sm:$0xff]
  %v338 = vld [vmem:[#allocation2 + $0x30] sm:$0xff]
  %339 = vmatprep.subr.mxu0 0.0
  %340 = vmatpush1.msra.mxu0 %v332
  %341 = vmatprep.subr.mxu0 0.0
  %342 = vmatpush1.msra.mxu0 %v333
  %343 = vmatprep.subr.mxu0 0.0
  %344 = vmatpush1.msra.mxu0 %v334
  %345 = vmatprep.subr.mxu0 0.0
  %346 = vmatpush1.msra.mxu0 %v335
  %347 = vmatprep.subr.mxu0 0.0
  %348 = vmatpush1.msra.mxu0 %v336
  %349 = vmatprep.subr.mxu0 0.0
  %350 = vmatpush1.msra.mxu0 %v337
  %351 = vmatprep.subr.mxu0 0.0
  %352 = vmatpush1.msra.mxu0 %v338
  %353 = vmatprep.subr.mxu0 0.0
  %354 = vmatpush1.msra.mxu0 0.0
  %355 = vmatprep.subr.mxu0 0.0
  %356 = vmatpush1.msra.mxu0 0.0
  %357 = vmatprep.subr.mxu0 0.0
  %358 = vmatpush1.msra.mxu0 0.0
  %359 = vmatprep.subr.mxu0 0.0
  %360 = vmatpush1.msra.mxu0 0.0
  %361 = vmatprep.subr.mxu0 0.0
  %362 = vmatpush1.msra.mxu0 0.0
  %363 = vmatprep.subr.mxu0 0.0
  %364 = vmatpush1.msra.mxu0 0.0
  %365 = vmatprep.subr.mxu0 0.0
  %366 = vmatpush1.msra.mxu0 0.0
  %367 = vmatprep.subr.mxu0 0.0
  %368 = vmatpush1.msra.mxu0 0.0
  %369 = vmatprep.subr.mxu0 0.0
  %370 = vmatpush1.msra.mxu0 0.0
  %371 = vmatprep.subr.mxu0 0.0
  %372 = vmatpush1.msra.mxu0 0.0
  %373 = vmatprep.subr.mxu0 0.0
  %374 = vmatpush1.msra.mxu0 0.0
  %375 = vmatprep.subr.mxu0 0.0
  %376 = vmatpush1.msra.mxu0 0.0
  %377 = vmatprep.subr.mxu0 0.0
  %378 = vmatpush1.msra.mxu0 0.0
  %379 = vmatprep.subr.mxu0 0.0
  %380 = vmatpush1.msra.mxu0 0.0
  %381 = vmatprep.subr.mxu0 0.0
  %382 = vmatpush1.msra.mxu0 0.0
  %383 = vmatprep.subr.mxu0 0.0
  %384 = vmatpush1.msra.mxu0 0.0
  %385 = vmatprep.subr.mxu0 0.0
  %386 = vmatpush1.msra.mxu0 0.0
  %387 = vmatprep.subr.mxu0 0.0
  %388 = vmatpush1.msra.mxu0 0.0
  %389 = vmatprep.subr.mxu0 0.0
  %390 = vmatpush1.msra.mxu0 0.0
  %391 = vmatprep.subr.mxu0 0.0
  %392 = vmatpush1.msra.mxu0 0.0
  %393 = vmatprep.subr.mxu0 0.0
  %394 = vmatpush1.msra.mxu0 0.0
  %395 = vmatprep.subr.mxu0 0.0
  %396 = vmatpush1.msra.mxu0 0.0
  %397 = vmatprep.subr.mxu0 0.0
  %398 = vmatpush1.msra.mxu0 0.0
  %399 = vmatprep.subr.mxu0 0.0
  %400 = vmatpush1.msra.mxu0 0.0
  %401 = vmatprep.subr.mxu0 0.0
  %402 = vmatpush1.msra.mxu0 0.0
  %403 = vmatprep.mubr.f32.mxu0 0.0
  %404 = vmatmul.mubr.f32.gmra.mrb[0].mxu0 %v115
  %v405 = vpop.f32.mrb[0].mxu0
  %v406 = vadd.f32 %v36, %v405
  %v407 = vpop.f32.mrb[0].mxu0
  %408 = vmatprep.mubr.f32.mxu0 0.0
  %409 = vmatmul.mubr.f32.gmra.mrb[0].mxu0 %v118
  %v410 = vpop.f32.mrb[0].mxu0
  %v411 = vadd.f32 %v41, %v410
  %v412 = vpop.f32.mrb[0].mxu0
  %413 = vmatprep.mubr.f32.mxu0 0.0
  %414 = vmatmul.mubr.f32.gmra.mrb[0].mxu0 %v121
  %v415 = vpop.f32.mrb[0].mxu0
  %v416 = vadd.f32 %v46, %v415
  %v417 = vpop.f32.mrb[0].mxu0
  %418 = vmatprep.mubr.f32.mxu0 0.0
  %419 = vmatmul.mubr.f32.gmra.mrb[0].mxu0 %v124
  %v420 = vpop.f32.mrb[0].mxu0
  %v421 = vadd.f32 %v51, %v420
  %v422 = vpop.f32.mrb[0].mxu0
  %423 = vdwg.mxu0
  %v424 = vtanh.pop %v406
  %v425 = vtanh.pop %v411
  %v426 = vtanh.pop %v416
  %v427 = vtanh.pop %v421
  %428 = vmatprep.subr.mxu0 0.0
  %429 = vmatpush1.msra.mxu0 %v424
  %430 = vmatprep.subr.mxu0 0.0
  %431 = vmatpush1.msra.mxu0 %v425
  %432 = vmatprep.subr.mxu0 0.0
  %433 = vmatpush1.msra.mxu0 %v426
  %434 = vmatprep.subr.mxu0 0.0
  %435 = vmatpush1.msra.mxu0 %v427
  %436 = vmatprep.subr.mxu0 0.0
  %437 = vmatpush1.msra.mxu0 0.0
  %438 = vmatprep.subr.mxu0 0.0
  %439 = vmatpush1.msra.mxu0 0.0
  %440 = vmatprep.subr.mxu0 0.0
  %441 = vmatpush1.msra.mxu0 0.0
  %442 = vmatprep.subr.mxu0 0.0
  %443 = vmatpush1.msra.mxu0 0.0
  %444 = vmatprep.subr.mxu0 0.0
  %445 = vmatpush1.msra.mxu0 0.0
  %446 = vmatprep.subr.mxu0 0.0
  %447 = vmatpush1.msra.mxu0 0.0
  %448 = vmatprep.subr.mxu0 0.0
  %449 = vmatpush1.msra.mxu0 0.0
  %450 = vmatprep.subr.mxu0 0.0
  %451 = vmatpush1.msra.mxu0 0.0
  %452 = vmatprep.subr.mxu0 0.0
  %453 = vmatpush1.msra.mxu0 0.0
  %454 = vmatprep.subr.mxu0 0.0
  %455 = vmatpush1.msra.mxu0 0.0
  %456 = vmatprep.subr.mxu0 0.0
  %457 = vmatpush1.msra.mxu0 0.0
  %458 = vmatprep.subr.mxu0 0.0
  %459 = vmatpush1.msra.mxu0 0.0
  %460 = vmatprep.subr.mxu0 0.0
  %461 = vmatpush1.msra.mxu0 0.0
  %462 = vmatprep.subr.mxu0 0.0
  %463 = vmatpush1.msra.mxu0 0.0
  %464 = vmatprep.subr.mxu0 0.0
  %465 = vmatpush1.msra.mxu0 0.0
  %466 = vmatprep.subr.mxu0 0.0
  %467 = vmatpush1.msra.mxu0 0.0
  %468 = vmatprep.subr.mxu0 0.0
  %469 = vmatpush1.msra.mxu0 0.0
  %470 = vmatprep.subr.mxu0 0.0
  %471 = vmatpush1.msra.mxu0 0.0
  %472 = vmatprep.subr.mxu0 0.0
  %473 = vmatpush1.msra.mxu0 0.0
  %474 = vmatprep.subr.mxu0 0.0
  %475 = vmatpush1.msra.mxu0 0.0
  %476 = vmatprep.subr.mxu0 0.0
  %477 = vmatpush1.msra.mxu0 0.0
  %478 = vmatprep.subr.mxu0 0.0
  %479 = vmatpush1.msra.mxu0 0.0
  %480 = vmatprep.subr.mxu0 0.0
  %481 = vmatpush1.msra.mxu0 0.0
  %482 = vmatprep.subr.mxu0 0.0
  %483 = vmatpush1.msra.mxu0 0.0
  %484 = vmatprep.subr.mxu0 0.0
  %485 = vmatpush1.msra.mxu0 0.0
  %486 = vmatprep.subr.mxu0 0.0
  %487 = vmatpush1.msra.mxu0 0.0
  %488 = vmatprep.subr.mxu0 0.0
  %489 = vmatpush1.msra.mxu0 0.0
  %490 = vmatprep.subr.mxu0 0.0
  %491 = vmatpush1.msra.mxu0 0.0
  %492 = vmatprep.mubr.f32.mxu0 0.0
  %493 = vmatmul.mubr.f32.gmra.mrb[0].mxu0 %v217
  %v494 = vpop.f32.mrb[0].mxu0
  %v495 = vadd.f32 %v55, %v494
  %v496 = vpop.f32.mrb[0].mxu0
  %497 = vmatprep.mubr.f32.mxu0 0.0
  %498 = vmatmul.mubr.f32.gmra.mrb[0].mxu0 %v220
  %v499 = vpop.f32.mrb[0].mxu0
  %v500 = vadd.f32 %v59, %v499
  %v501 = vpop.f32.mrb[0].mxu0
  %502 = vdwg.mxu0
  %v503 = vtanh.pop %v495
  %v504 = vtanh.pop %v500
  %v505 = vmul.f32 %v71, %v424
  %v506 = vmul.f32 %v75, %v425
  %v507 = vmul.f32 %v79, %v426
  %v508 = vmul.f32 %v83, %v427
  %v509 = vadd.f32 %v505, %v506
  %v510 = vadd.f32 %v509, %v507
  %v511 = vadd.f32 %v510, %v508
  %v512 = vrot.slane %v511, 4
  %v513 = vadd.f32 %v511, %v512
  %v514 = vrot.slane %v513, 2
  %v515 = vadd.f32 %v513, %v514
  %v516 = vrot.slane %v515, 1
  %v517 = vadd.f32 %v515, %v516
  %v518 = vmul.f32 %v63, %v503
  %v519 = vmul.f32 %v67, %v504
  %v520 = vadd.f32 %v518, %v519
  %v521 = vrot.slane %v520, 4
  %v522 = vadd.f32 %v520, %v521
  %v523 = vrot.slane %v522, 2
  %v524 = vadd.f32 %v522, %v523
  %v525 = vrot.slane %v524, 1
  %v526 = vadd.f32 %v524, %v525
  %v527 = vadd.f32 %v517, %v526
  %v528 = vadd.f32 %v322, %v527
  %529 = vst [vmem:[#allocation2] sm:$0xff] %v424
  %530 = vst [vmem:[#allocation2 + $0x8] sm:$0xff] %v425
  %531 = vst [vmem:[#allocation2 + $0x10] sm:$0xff] %v426
  %532 = vst [vmem:[#allocation2 + $0x18] sm:$0xff] %v427
  %533 = vst [vmem:[#allocation2 + $0x20] sm:$0xff] %v503
  %534 = vst [vmem:[#allocation2 + $0x28] sm:$0xff] %v504
  %s535 = scalar_lea.vmem %s2, 8
  %v536 = vld [vmem:[%s535] sm:$0x7]
  %537 = vst [vmem:[#allocation2 + $0x30] sm:$0x7] %v536
  %v538 = vld [vmem:[#allocation2] sm:$0xff]
  %v539 = vld [vmem:[#allocation2 + $0x8] sm:$0xff]
  %v540 = vld [vmem:[#allocation2 + $0x10] sm:$0xff]
  %v541 = vld [vmem:[#allocation2 + $0x18] sm:$0xff]
  %v542 = vld [vmem:[#allocation2 + $0x20] sm:$0xff]
  %v543 = vld [vmem:[#allocation2 + $0x28] sm:$0xff]
  %v544 = vld [vmem:[#allocation2 + $0x30] sm:$0xff]
  %545 = vmatprep.subr.mxu0 0.0
  %546 = vmatpush1.msra.mxu0 %v538
  %547 = vmatprep.subr.mxu0 0.0
  %548 = vmatpush1.msra.mxu0 %v539
  %549 = vmatprep.subr.mxu0 0.0
  %550 = vmatpush1.msra.mxu0 %v540
  %551 = vmatprep.subr.mxu0 0.0
  %552 = vmatpush1.msra.mxu0 %v541
  %553 = vmatprep.subr.mxu0 0.0
  %554 = vmatpush1.msra.mxu0 %v542
  %555 = vmatprep.subr.mxu0 0.0
  %556 = vmatpush1.msra.mxu0 %v543
  %557 = vmatprep.subr.mxu0 0.0
  %558 = vmatpush1.msra.mxu0 %v544
  %559 = vmatprep.subr.mxu0 0.0
  %560 = vmatpush1.msra.mxu0 0.0
  %561 = vmatprep.subr.mxu0 0.0
  %562 = vmatpush1.msra.mxu0 0.0
  %563 = vmatprep.subr.mxu0 0.0
  %564 = vmatpush1.msra.mxu0 0.0
  %565 = vmatprep.subr.mxu0 0.0
  %566 = vmatpush1.msra.mxu0 0.0
  %567 = vmatprep.subr.mxu0 0.0
  %568 = vmatpush1.msra.mxu0 0.0
  %569 = vmatprep.subr.mxu0 0.0
  %570 = vmatpush1.msra.mxu0 0.0
  %571 = vmatprep.subr.mxu0 0.0
  %572 = vmatpush1.msra.mxu0 0.0
  %573 = vmatprep.subr.mxu0 0.0
  %574 = vmatpush1.msra.mxu0 0.0
  %575 = vmatprep.subr.mxu0 0.0
  %576 = vmatpush1.msra.mxu0 0.0
  %577 = vmatprep.subr.mxu0 0.0
  %578 = vmatpush1.msra.mxu0 0.0
  %579 = vmatprep.subr.mxu0 0.0
  %580 = vmatpush1.msra.mxu0 0.0
  %581 = vmatprep.subr.mxu0 0.0
  %582 = vmatpush1.msra.mxu0 0.0
  %583 = vmatprep.subr.mxu0 0.0
  %584 = vmatpush1.msra.mxu0 0.0
  %585 = vmatprep.subr.mxu0 0.0
  %586 = vmatpush1.msra.mxu0 0.0
  %587 = vmatprep.subr.mxu0 0.0
  %588 = vmatpush1.msra.mxu0 0.0
  %589 = vmatprep.subr.mxu0 0.0
  %590 = vmatpush1.msra.mxu0 0.0
  %591 = vmatprep.subr.mxu0 0.0
  %592 = vmatpush1.msra.mxu0 0.0
  %593 = vmatprep.subr.mxu0 0.0
  %594 = vmatpush1.msra.mxu0 0.0
  %595 = vmatprep.subr.mxu0 0.0
  %596 = vmatpush1.msra.mxu0 0.0
  %597 = vmatprep.subr.mxu0 0.0
  %598 = vmatpush1.msra.mxu0 0.0
  %599 = vmatprep.subr.mxu0 0.0
  %600 = vmatpush1.msra.mxu0 0.0
  %601 = vmatprep.subr.mxu0 0.0
  %602 = vmatpush1.msra.mxu0 0.0
  %603 = vmatprep.subr.mxu0 0.0
  %604 = vmatpush1.msra.mxu0 0.0
  %605 = vmatprep.subr.mxu0 0.0
  %606 = vmatpush1.msra.mxu0 0.0
  %607 = vmatprep.subr.mxu0 0.0
  %608 = vmatpush1.msra.mxu0 0.0
  %609 = vmatprep.mubr.f32.mxu0 0.0
  %610 = vmatmul.mubr.f32.gmra.mrb[0].mxu0 %v115
  %v611 = vpop.f32.mrb[0].mxu0
  %v612 = vadd.f32 %v36, %v611
  %v613 = vpop.f32.mrb[0].mxu0
  %614 = vmatprep.mubr.f32.mxu0 0.0
  %615 = vmatmul.mubr.f32.gmra.mrb[0].mxu0 %v118
  %v616 = vpop.f32.mrb[0].mxu0
  %v617 = vadd.f32 %v41, %v616
  %v618 = vpop.f32.mrb[0].mxu0
  %619 = vmatprep.mubr.f32.mxu0 0.0
  %620 = vmatmul.mubr.f32.gmra.mrb[0].mxu0 %v121
  %v621 = vpop.f32.mrb[0].mxu0
  %v622 = vadd.f32 %v46, %v621
  %v623 = vpop.f32.mrb[0].mxu0
  %624 = vmatprep.mubr.f32.mxu0 0.0
  %625 = vmatmul.mubr.f32.gmra.mrb[0].mxu0 %v124
  %v626 = vpop.f32.mrb[0].mxu0
  %v627 = vadd.f32 %v51, %v626
  %v628 = vpop.f32.mrb[0].mxu0
  %629 = vdwg.mxu0
  %v630 = vtanh.pop %v612
  %v631 = vtanh.pop %v617
  %v632 = vtanh.pop %v622
  %v633 = vtanh.pop %v627
  %634 = vmatprep.subr.mxu0 0.0
  %635 = vmatpush1.msra.mxu0 %v630
  %636 = vmatprep.subr.mxu0 0.0
  %637 = vmatpush1.msra.mxu0 %v631
  %638 = vmatprep.subr.mxu0 0.0
  %639 = vmatpush1.msra.mxu0 %v632
  %640 = vmatprep.subr.mxu0 0.0
  %641 = vmatpush1.msra.mxu0 %v633
  %642 = vmatprep.subr.mxu0 0.0
  %643 = vmatpush1.msra.mxu0 0.0
  %644 = vmatprep.subr.mxu0 0.0
  %645 = vmatpush1.msra.mxu0 0.0
  %646 = vmatprep.subr.mxu0 0.0
  %647 = vmatpush1.msra.mxu0 0.0
  %648 = vmatprep.subr.mxu0 0.0
  %649 = vmatpush1.msra.mxu0 0.0
  %650 = vmatprep.subr.mxu0 0.0
  %651 = vmatpush1.msra.mxu0 0.0
  %652 = vmatprep.subr.mxu0 0.0
  %653 = vmatpush1.msra.mxu0 0.0
  %654 = vmatprep.subr.mxu0 0.0
  %655 = vmatpush1.msra.mxu0 0.0
  %656 = vmatprep.subr.mxu0 0.0
  %657 = vmatpush1.msra.mxu0 0.0
  %658 = vmatprep.subr.mxu0 0.0
  %659 = vmatpush1.msra.mxu0 0.0
  %660 = vmatprep.subr.mxu0 0.0
  %661 = vmatpush1.msra.mxu0 0.0
  %662 = vmatprep.subr.mxu0 0.0
  %663 = vmatpush1.msra.mxu0 0.0
  %664 = vmatprep.subr.mxu0 0.0
  %665 = vmatpush1.msra.mxu0 0.0
  %666 = vmatprep.subr.mxu0 0.0
  %667 = vmatpush1.msra.mxu0 0.0
  %668 = vmatprep.subr.mxu0 0.0
  %669 = vmatpush1.msra.mxu0 0.0
  %670 = vmatprep.subr.mxu0 0.0
  %671 = vmatpush1.msra.mxu0 0.0
  %672 = vmatprep.subr.mxu0 0.0
  %673 = vmatpush1.msra.mxu0 0.0
  %674 = vmatprep.subr.mxu0 0.0
  %675 = vmatpush1.msra.mxu0 0.0
  %676 = vmatprep.subr.mxu0 0.0
  %677 = vmatpush1.msra.mxu0 0.0
  %678 = vmatprep.subr.mxu0 0.0
  %679 = vmatpush1.msra.mxu0 0.0
  %680 = vmatprep.subr.mxu0 0.0
  %681 = vmatpush1.msra.mxu0 0.0
  %682 = vmatprep.subr.mxu0 0.0
  %683 = vmatpush1.msra.mxu0 0.0
  %684 = vmatprep.subr.mxu0 0.0
  %685 = vmatpush1.msra.mxu0 0.0
  %686 = vmatprep.subr.mxu0 0.0
  %687 = vmatpush1.msra.mxu0 0.0
  %688 = vmatprep.subr.mxu0 0.0
  %689 = vmatpush1.msra.mxu0 0.0
  %690 = vmatprep.subr.mxu0 0.0
  %691 = vmatpush1.msra.mxu0 0.0
  %692 = vmatprep.subr.mxu0 0.0
  %693 = vmatpush1.msra.mxu0 0.0
  %694 = vmatprep.subr.mxu0 0.0
  %695 = vmatpush1.msra.mxu0 0.0
  %696 = vmatprep.subr.mxu0 0.0
  %697 = vmatpush1.msra.mxu0 0.0
  %698 = vmatprep.mubr.f32.mxu0 0.0
  %699 = vmatmul.mubr.f32.gmra.mrb[0].mxu0 %v217
  %v700 = vpop.f32.mrb[0].mxu0
  %v701 = vadd.f32 %v55, %v700
  %v702 = vpop.f32.mrb[0].mxu0
  %703 = vmatprep.mubr.f32.mxu0 0.0
  %704 = vmatmul.mubr.f32.gmra.mrb[0].mxu0 %v220
  %v705 = vpop.f32.mrb[0].mxu0
  %v706 = vadd.f32 %v59, %v705
  %v707 = vpop.f32.mrb[0].mxu0
  %708 = vdwg.mxu0
  %v709 = vtanh.pop %v701
  %v710 = vtanh.pop %v706
  %v711 = vmul.f32 %v71, %v630
  %v712 = vmul.f32 %v75, %v631
  %v713 = vmul.f32 %v79, %v632
  %v714 = vmul.f32 %v83, %v633
  %v715 = vadd.f32 %v711, %v712
  %v716 = vadd.f32 %v715, %v713
  %v717 = vadd.f32 %v716, %v714
  %v718 = vrot.slane %v717, 4
  %v719 = vadd.f32 %v717, %v718
  %v720 = vrot.slane %v719, 2
  %v721 = vadd.f32 %v719, %v720
  %v722 = vrot.slane %v721, 1
  %v723 = vadd.f32 %v721, %v722
  %v724 = vmul.f32 %v63, %v709
  %v725 = vmul.f32 %v67, %v710
  %v726 = vadd.f32 %v724, %v725
  %v727 = vrot.slane %v726, 4
  %v728 = vadd.f32 %v726, %v727
  %v729 = vrot.slane %v728, 2
  %v730 = vadd.f32 %v728, %v729
  %v731 = vrot.slane %v730, 1
  %v732 = vadd.f32 %v730, %v731
  %v733 = vadd.f32 %v723, %v732
  %v734 = vadd.f32 %v528, %v733
  %735 = vst [vmem:[#allocation2] sm:$0xff] %v630
  %736 = vst [vmem:[#allocation2 + $0x8] sm:$0xff] %v631
  %737 = vst [vmem:[#allocation2 + $0x10] sm:$0xff] %v632
  %738 = vst [vmem:[#allocation2 + $0x18] sm:$0xff] %v633
  %739 = vst [vmem:[#allocation2 + $0x20] sm:$0xff] %v709
  %740 = vst [vmem:[#allocation2 + $0x28] sm:$0xff] %v710
  %s741 = scalar_lea.vmem %s2, 12
  %v742 = vld [vmem:[%s741] sm:$0x7]
  %743 = vst [vmem:[#allocation2 + $0x30] sm:$0x7] %v742
  %v744 = vld [vmem:[#allocation2] sm:$0xff]
  %v745 = vld [vmem:[#allocation2 + $0x8] sm:$0xff]
  %v746 = vld [vmem:[#allocation2 + $0x10] sm:$0xff]
  %v747 = vld [vmem:[#allocation2 + $0x18] sm:$0xff]
  %v748 = vld [vmem:[#allocation2 + $0x20] sm:$0xff]
  %v749 = vld [vmem:[#allocation2 + $0x28] sm:$0xff]
  %v750 = vld [vmem:[#allocation2 + $0x30] sm:$0xff]
  %751 = vmatprep.subr.mxu0 0.0
  %752 = vmatpush1.msra.mxu0 %v744
  %753 = vmatprep.subr.mxu0 0.0
  %754 = vmatpush1.msra.mxu0 %v745
  %755 = vmatprep.subr.mxu0 0.0
  %756 = vmatpush1.msra.mxu0 %v746
  %757 = vmatprep.subr.mxu0 0.0
  %758 = vmatpush1.msra.mxu0 %v747
  %759 = vmatprep.subr.mxu0 0.0
  %760 = vmatpush1.msra.mxu0 %v748
  %761 = vmatprep.subr.mxu0 0.0
  %762 = vmatpush1.msra.mxu0 %v749
  %763 = vmatprep.subr.mxu0 0.0
  %764 = vmatpush1.msra.mxu0 %v750
  %765 = vmatprep.subr.mxu0 0.0
  %766 = vmatpush1.msra.mxu0 0.0
  %767 = vmatprep.subr.mxu0 0.0
  %768 = vmatpush1.msra.mxu0 0.0
  %769 = vmatprep.subr.mxu0 0.0
  %770 = vmatpush1.msra.mxu0 0.0
  %771 = vmatprep.subr.mxu0 0.0
  %772 = vmatpush1.msra.mxu0 0.0
  %773 = vmatprep.subr.mxu0 0.0
  %774 = vmatpush1.msra.mxu0 0.0
  %775 = vmatprep.subr.mxu0 0.0
  %776 = vmatpush1.msra.mxu0 0.0
  %777 = vmatprep.subr.mxu0 0.0
  %778 = vmatpush1.msra.mxu0 0.0
  %779 = vmatprep.subr.mxu0 0.0
  %780 = vmatpush1.msra.mxu0 0.0
  %781 = vmatprep.subr.mxu0 0.0
  %782 = vmatpush1.msra.mxu0 0.0
  %783 = vmatprep.subr.mxu0 0.0
  %784 = vmatpush1.msra.mxu0 0.0
  %785 = vmatprep.subr.mxu0 0.0
  %786 = vmatpush1.msra.mxu0 0.0
  %787 = vmatprep.subr.mxu0 0.0
  %788 = vmatpush1.msra.mxu0 0.0
  %789 = vmatprep.subr.mxu0 0.0
  %790 = vmatpush1.msra.mxu0 0.0
  %791 = vmatprep.subr.mxu0 0.0
  %792 = vmatpush1.msra.mxu0 0.0
  %793 = vmatprep.subr.mxu0 0.0
  %794 = vmatpush1.msra.mxu0 0.0
  %795 = vmatprep.subr.mxu0 0.0
  %796 = vmatpush1.msra.mxu0 0.0
  %797 = vmatprep.subr.mxu0 0.0
  %798 = vmatpush1.msra.mxu0 0.0
  %799 = vmatprep.subr.mxu0 0.0
  %800 = vmatpush1.msra.mxu0 0.0
  %801 = vmatprep.subr.mxu0 0.0
  %802 = vmatpush1.msra.mxu0 0.0
  %803 = vmatprep.subr.mxu0 0.0
  %804 = vmatpush1.msra.mxu0 0.0
  %805 = vmatprep.subr.mxu0 0.0
  %806 = vmatpush1.msra.mxu0 0.0
  %807 = vmatprep.subr.mxu0 0.0
  %808 = vmatpush1.msra.mxu0 0.0
  %809 = vmatprep.subr.mxu0 0.0
  %810 = vmatpush1.msra.mxu0 0.0
  %811 = vmatprep.subr.mxu0 0.0
  %812 = vmatpush1.msra.mxu0 0.0
  %813 = vmatprep.subr.mxu0 0.0
  %814 = vmatpush1.msra.mxu0 0.0
  %815 = vmatprep.mubr.f32.mxu0 0.0
  %816 = vmatmul.mubr.f32.gmra.mrb[0].mxu0 %v115
  %v817 = vpop.f32.mrb[0].mxu0
  %v818 = vadd.f32 %v36, %v817
  %v819 = vpop.f32.mrb[0].mxu0
  %820 = vmatprep.mubr.f32.mxu0 0.0
  %821 = vmatmul.mubr.f32.gmra.mrb[0].mxu0 %v118
  %v822 = vpop.f32.mrb[0].mxu0
  %v823 = vadd.f32 %v41, %v822
  %v824 = vpop.f32.mrb[0].mxu0
  %825 = vmatprep.mubr.f32.mxu0 0.0
  %826 = vmatmul.mubr.f32.gmra.mrb[0].mxu0 %v121
  %v827 = vpop.f32.mrb[0].mxu0
  %v828 = vadd.f32 %v46, %v827
  %v829 = vpop.f32.mrb[0].mxu0
  %830 = vmatprep.mubr.f32.mxu0 0.0
  %831 = vmatmul.mubr.f32.gmra.mrb[0].mxu0 %v124
  %v832 = vpop.f32.mrb[0].mxu0
  %v833 = vadd.f32 %v51, %v832
  %v834 = vpop.f32.mrb[0].mxu0
  %835 = vdwg.mxu0
  %v836 = vtanh.pop %v818
  %v837 = vtanh.pop %v823
  %v838 = vtanh.pop %v828
  %v839 = vtanh.pop %v833
  %840 = vmatprep.subr.mxu0 0.0
  %841 = vmatpush1.msra.mxu0 %v836
  %842 = vmatprep.subr.mxu0 0.0
  %843 = vmatpush1.msra.mxu0 %v837
  %844 = vmatprep.subr.mxu0 0.0
  %845 = vmatpush1.msra.mxu0 %v838
  %846 = vmatprep.subr.mxu0 0.0
  %847 = vmatpush1.msra.mxu0 %v839
  %848 = vmatprep.subr.mxu0 0.0
  %849 = vmatpush1.msra.mxu0 0.0
  %850 = vmatprep.subr.mxu0 0.0
  %851 = vmatpush1.msra.mxu0 0.0
  %852 = vmatprep.subr.mxu0 0.0
  %853 = vmatpush1.msra.mxu0 0.0
  %854 = vmatprep.subr.mxu0 0.0
  %855 = vmatpush1.msra.mxu0 0.0
  %856 = vmatprep.subr.mxu0 0.0
  %857 = vmatpush1.msra.mxu0 0.0
  %858 = vmatprep.subr.mxu0 0.0
  %859 = vmatpush1.msra.mxu0 0.0
  %860 = vmatprep.subr.mxu0 0.0
  %861 = vmatpush1.msra.mxu0 0.0
  %862 = vmatprep.subr.mxu0 0.0
  %863 = vmatpush1.msra.mxu0 0.0
  %864 = vmatprep.subr.mxu0 0.0
  %865 = vmatpush1.msra.mxu0 0.0
  %866 = vmatprep.subr.mxu0 0.0
  %867 = vmatpush1.msra.mxu0 0.0
  %868 = vmatprep.subr.mxu0 0.0
  %869 = vmatpush1.msra.mxu0 0.0
  %870 = vmatprep.subr.mxu0 0.0
  %871 = vmatpush1.msra.mxu0 0.0
  %872 = vmatprep.subr.mxu0 0.0
  %873 = vmatpush1.msra.mxu0 0.0
  %874 = vmatprep.subr.mxu0 0.0
  %875 = vmatpush1.msra.mxu0 0.0
  %876 = vmatprep.subr.mxu0 0.0
  %877 = vmatpush1.msra.mxu0 0.0
  %878 = vmatprep.subr.mxu0 0.0
  %879 = vmatpush1.msra.mxu0 0.0
  %880 = vmatprep.subr.mxu0 0.0
  %881 = vmatpush1.msra.mxu0 0.0
  %882 = vmatprep.subr.mxu0 0.0
  %883 = vmatpush1.msra.mxu0 0.0
  %884 = vmatprep.subr.mxu0 0.0
  %885 = vmatpush1.msra.mxu0 0.0
  %886 = vmatprep.subr.mxu0 0.0
  %887 = vmatpush1.msra.mxu0 0.0
  %888 = vmatprep.subr.mxu0 0.0
  %889 = vmatpush1.msra.mxu0 0.0
  %890 = vmatprep.subr.mxu0 0.0
  %891 = vmatpush1.msra.mxu0 0.0
  %892 = vmatprep.subr.mxu0 0.0
  %893 = vmatpush1.msra.mxu0 0.0
  %894 = vmatprep.subr.mxu0 0.0
  %895 = vmatpush1.msra.mxu0 0.0
  %896 = vmatprep.subr.mxu0 0.0
  %897 = vmatpush1.msra.mxu0 0.0
  %898 = vmatprep.subr.mxu0 0.0
  %899 = vmatpush1.msra.mxu0 0.0
  %900 = vmatprep.subr.mxu0 0.0
  %901 = vmatpush1.msra.mxu0 0.0
  %902 = vmatprep.subr.mxu0 0.0
  %903 = vmatpush1.msra.mxu0 0.0
  %904 = vmatprep.mubr.f32.mxu0 0.0
  %905 = vmatmul.mubr.f32.gmra.mrb[0].mxu0 %v217
  %v906 = vpop.f32.mrb[0].mxu0
  %v907 = vadd.f32 %v55, %v906
  %v908 = vpop.f32.mrb[0].mxu0
  %909 = vmatprep.mubr.f32.mxu0 0.0
  %910 = vmatmul.mubr.f32.gmra.mrb[0].mxu0 %v220
  %v911 = vpop.f32.mrb[0].mxu0
  %v912 = vadd.f32 %v59, %v911
  %v913 = vpop.f32.mrb[0].mxu0
  %914 = vdwg.mxu0
  %v915 = vtanh.pop %v907
  %v916 = vtanh.pop %v912
  %v917 = vmul.f32 %v71, %v836
  %v918 = vmul.f32 %v75, %v837
  %v919 = vmul.f32 %v79, %v838
  %v920 = vmul.f32 %v83, %v839
  %v921 = vadd.f32 %v917, %v918
  %v922 = vadd.f32 %v921, %v919
  %v923 = vadd.f32 %v922, %v920
  %v924 = vrot.slane %v923, 4
  %v925 = vadd.f32 %v923, %v924
  %v926 = vrot.slane %v925, 2
  %v927 = vadd.f32 %v925, %v926
  %v928 = vrot.slane %v927, 1
  %v929 = vadd.f32 %v927, %v928
  %v930 = vmul.f32 %v63, %v915
  %v931 = vmul.f32 %v67, %v916
  %v932 = vadd.f32 %v930, %v931
  %v933 = vrot.slane %v932, 4
  %v934 = vadd.f32 %v932, %v933
  %v935 = vrot.slane %v934, 2
  %v936 = vadd.f32 %v934, %v935
  %v937 = vrot.slane %v936, 1
  %v938 = vadd.f32 %v936, %v937
  %v939 = vadd.f32 %v929, %v938
  %v940 = vadd.f32 %v734, %v939
  %941 = vst [vmem:[%s6] sm:$0x1] %v940
  // Predicated region
  $region26: #{mpc_planner_forward.2} parent=0 // pred_check
    _
  $region27: #{mpc_planner_forward.2} parent=0 // pred_check_branch
    %943 = sbr.rel (0) target = $region29
  $region28: #{mpc_planner_forward.2} parent=0 // pred_region
    _
  $region29: #{mpc_planner_forward.2} parent=0 // pred_fallthru
    _
  // Predicated region
  $region30: #{mpc_planner_forward.2} parent=0 // pred_check
    _
  $region31: #{mpc_planner_forward.2} parent=0 // pred_check_branch
    %945 = sbr.rel (0) target = $region33
  $region32: #{mpc_planner_forward.2} parent=0 // pred_region
    _
  $region33: #{mpc_planner_forward.2} parent=0 // pred_fallthru
    _

</llo_original>
